<compile_context>
chip_gen: v7x
topology: tpu7x:2x2x1
jax: 0.10.0
libtpu: 0.0.40
codegen_flags: <defaults>
</compile_context>

<pallas_src>
import jax
import jax.numpy as jnp
from jax import lax
from jax.experimental import pallas as pl
from jax.experimental.pallas import tpu as pltpu


def attention_kernel(hidden_ref, enc2d_ref, w_h_ref, w_e_ref, b_ref, v_ref,
                     ctx_ref, attn_ref):
    B, L = attn_ref.shape
    H = hidden_ref.shape[1]

    hidden = hidden_ref[...]          # (B, H)    MXU dtype (bf16 in demo)
    enc2d = enc2d_ref[...]            # (B*L, H)  f32 (kept f32 for context math)
    w_h = w_h_ref[...]                # (H, H)    (K, N) layout, MXU dtype
    w_e = w_e_ref[...]                # (H, H)    (K, N) layout, MXU dtype
    b = b_ref[...]                    # (1, H)    f32
    v = v_ref[...]                    # (1, H)    f32

    # Standard contraction: contract dim 1 of x with dim 0 of W (x @ W).
    dn = (((1,), (0,)), ((), ()))

    # cat([hidden, enc]) @ W.T + b == hidden @ w_h + enc @ w_e + b
    h_proj = lax.dot_general(hidden, w_h, dn,
                             preferred_element_type=jnp.float32) + b      # (B, H)

    # Single lane-dense (B*L, H) x (H, H) MXU push; operands cast to the
    # weight (MXU) dtype, f32 accumulate.
    e_proj = lax.dot_general(enc2d.astype(w_e_ref.dtype), w_e, dn,
                             preferred_element_type=jnp.float32)          # (B*L, H)

    # (B*L, H) -> (B, L, H): layout-free (L % 8 == 0, last dim unchanged).
    e_proj = e_proj.reshape(B, L, H)
    enc = enc2d.reshape(B, L, H)

    energy = jnp.tanh(e_proj + h_proj[:, None, :])                        # (B, L, H)

    # v-projection (output width 1): VPU multiply + lane reduce, MXU stays idle.
    scores = jnp.sum(energy * v, axis=-1)                                 # (B, L)

    # Softmax over the sequence axis; exact reciprocal (one per row) for parity.
    m = jnp.max(scores, axis=1, keepdims=True)
    ex = jnp.exp(scores - m)
    denom = jnp.sum(ex, axis=1, keepdims=True)
    weights = ex * pl.reciprocal(denom, approx=False)                     # (B, L)

    # context_vector = sum_L enc * weights : VPU multiply + sublane reduce (f32).
    context = jnp.sum(enc * weights[:, :, None], axis=1)                  # (B, H)

    ctx_ref[...] = context.astype(ctx_ref.dtype)
    attn_ref[...] = weights.astype(attn_ref.dtype)


def attention_forward(hidden, encoder_outputs, w_attn, b_attn, w_v,
                      *, mxu_dtype=jnp.bfloat16):
    """hidden: (B,H), encoder_outputs: (B,L,H),
       w_attn: (H, 2H) (PyTorch Linear.weight layout), b_attn: (H,), w_v: (1, H)."""
    B, H = hidden.shape
    _, L, _ = encoder_outputs.shape
    assert L % 8 == 0, "L must be a multiple of 8 for layout-free in-kernel reshapes"

    # One-time HBM-side weight prep (free relative to kernel time):
    # split columns, transpose each half to (K, N), cast to the MXU dtype.
    w_h_t = jnp.asarray(w_attn[:, :H].T, dtype=mxu_dtype)   # (H, H) hidden half
    w_e_t = jnp.asarray(w_attn[:, H:].T, dtype=mxu_dtype)   # (H, H) encoder half
    hidden_mxu = hidden.astype(mxu_dtype)

    b2d = b_attn.reshape(1, H).astype(jnp.float32)
    v2d = w_v.reshape(1, H).astype(jnp.float32)

    # Free metadata flatten in HBM: the big matmul input is already 2D.
    enc2d = encoder_outputs.reshape(B * L, H)

    itemsize = jnp.dtype(mxu_dtype).itemsize
    cost = pl.CostEstimate(
        flops=2 * B * H * H          # hidden projection
              + 2 * B * L * H * H    # encoder projection
              + 2 * B * L * H        # v-projection reduce
              + 2 * B * L * H,       # context reduce
        transcendentals=B * L * H + B * L,   # tanh + exp
        bytes_accessed=(itemsize * (B * H + 2 * H * H)      # hidden + weights (MXU dtype)
                        + 4 * (B * L * H + 2 * H)           # enc (f32) + bias + v
                        + 4 * (B * H + B * L)),              # outputs
    )

    vmem = pl.BlockSpec(memory_space=pltpu.MemorySpace.VMEM)
    ctx, attn_w = pl.pallas_call(
        attention_kernel,
        out_shape=(jax.ShapeDtypeStruct((B, H), jnp.float32),
                   jax.ShapeDtypeStruct((B, L), jnp.float32)),
        in_specs=[vmem] * 6,
        out_specs=(vmem, vmem),
        compiler_params=pltpu.CompilerParams(
            # Above the 16 MiB (v5e) / 32 MiB (v6e, v7x) scoped defaults,
            # below v7x's 64 MiB physical VMEM.
            vmem_limit_bytes=48 << 20,
        ),
        cost_estimate=cost,
    )(hidden_mxu, enc2d, w_h_t, w_e_t, b2d, v2d)
    return ctx, attn_w


def reference_forward(hidden, encoder_outputs, w_attn, b_attn, w_v):
    B, H = hidden.shape
    L = encoder_outputs.shape[1]
    rep = jnp.repeat(hidden[:, None, :], L, axis=1)                 # (B, L, H)
    cat = jnp.concatenate([rep, encoder_outputs], axis=2)           # (B, L, 2H)
    energy = jnp.tanh(jnp.einsum('blk,hk->blh', cat, w_attn) + b_attn)
    scores = jnp.einsum('blh,oh->blo', energy, w_v)[..., 0]
    weights = jax.nn.softmax(scores, axis=1)
    context = jnp.sum(encoder_outputs * weights[:, :, None], axis=1)
    return context, weights


if __name__ == "__main__":
    B, L, H = 2, 8, 32

    key = jax.random.PRNGKey(0)
    k1, k2, k3, k4, k5 = jax.random.split(key, 5)

    # Deterministic parameter init (PyTorch Linear-style uniform bounds).
    bound_attn = 1.0 / jnp.sqrt(2.0 * H)
    w_attn = jax.random.uniform(k1, (H, 2 * H), jnp.float32,
                                -bound_attn, bound_attn)            # Linear(2H -> H).weight
    b_attn = jax.random.uniform(k2, (H,), jnp.float32,
                                -bound_attn, bound_attn)            # Linear(2H -> H).bias
    bound_v = 1.0 / jnp.sqrt(1.0 * H)
    w_v = jax.random.uniform(k3, (1, H), jnp.float32,
                             -bound_v, bound_v)                     # Linear(H -> 1, bias=False).weight

    hidden = jax.random.normal(k4, (B, H), jnp.float32)
    encoder_outputs = jax.random.normal(k5, (B, L, H), jnp.float32)

    ctx_ref, attn_ref = reference_forward(hidden, encoder_outputs, w_attn, b_attn, w_v)

    # Default (production) path: bf16 MXU operands, f32 accumulate/elementwise.
    ctx, attn_w = attention_forward(hidden, encoder_outputs, w_attn, b_attn, w_v)
    jax.block_until_ready((ctx, attn_w))
    assert jnp.allclose(ctx, ctx_ref, atol=1e-2, rtol=1e-2)
    assert jnp.allclose(attn_w, attn_ref, atol=1e-2, rtol=1e-2)

    # Full-f32 path: tight parity check of the kernel structure itself.
    ctx32, attn32 = attention_forward(hidden, encoder_outputs, w_attn, b_attn, w_v,
                                      mxu_dtype=jnp.float32)
    jax.block_until_ready((ctx32, attn32))
    assert jnp.allclose(ctx32, ctx_ref, atol=1e-5, rtol=1e-5)
    assert jnp.allclose(attn32, attn_ref, atol=1e-5, rtol=1e-5)

    print("KERNEL_OK")
</pallas_src>

<mosaic_0001>
module attributes {stable_mosaic.version = 11 : i64} {
  func.func @attention_kernel(%arg0: memref<2x32xbf16, #tpu.memory_space<vmem>>, %arg1: memref<16x32xf32, #tpu.memory_space<vmem>>, %arg2: memref<32x32xbf16, #tpu.memory_space<vmem>>, %arg3: memref<32x32xbf16, #tpu.memory_space<vmem>>, %arg4: memref<1x32xf32, #tpu.memory_space<vmem>>, %arg5: memref<1x32xf32, #tpu.memory_space<vmem>>, %arg6: memref<2x32xf32, #tpu.memory_space<vmem>>, %arg7: memref<2x8xf32, #tpu.memory_space<vmem>>) attributes {dimension_semantics = [], scalar_prefetch = 0 : i64, scratch_operands = 0 : i64, tpu.core_type = #tpu.core_type<tc>} {
    %c0 = arith.constant 0 : index
    %c0_0 = arith.constant 0 : index
    %0 = vector.load %arg0[%c0, %c0_0] : memref<2x32xbf16, #tpu.memory_space<vmem>>, vector<2x32xbf16>
    %c0_1 = arith.constant 0 : index
    %c0_2 = arith.constant 0 : index
    %1 = vector.load %arg1[%c0_1, %c0_2] : memref<16x32xf32, #tpu.memory_space<vmem>>, vector<16x32xf32>
    %c0_3 = arith.constant 0 : index
    %c0_4 = arith.constant 0 : index
    %2 = vector.load %arg2[%c0_3, %c0_4] : memref<32x32xbf16, #tpu.memory_space<vmem>>, vector<32x32xbf16>
    %c0_5 = arith.constant 0 : index
    %c0_6 = arith.constant 0 : index
    %3 = vector.load %arg3[%c0_5, %c0_6] : memref<32x32xbf16, #tpu.memory_space<vmem>>, vector<32x32xbf16>
    %c0_7 = arith.constant 0 : index
    %c0_8 = arith.constant 0 : index
    %4 = vector.load %arg4[%c0_7, %c0_8] : memref<1x32xf32, #tpu.memory_space<vmem>>, vector<1x32xf32>
    %c0_9 = arith.constant 0 : index
    %c0_10 = arith.constant 0 : index
    %5 = vector.load %arg5[%c0_9, %c0_10] : memref<1x32xf32, #tpu.memory_space<vmem>>, vector<1x32xf32>
    %cst = arith.constant dense<0.000000e+00> : vector<2x32xf32>
    %6 = tpu.matmul %0, %2, %cst {dimension_numbers = #tpu.dot_dimension_numbers<[1], [0], [0], [1], [0, 0, 1, 1], [], []>} : vector<2x32xbf16>, vector<32x32xbf16>, vector<2x32xf32> -> vector<2x32xf32>
    %7 = vector.broadcast %4 : vector<1x32xf32> to vector<2x32xf32>
    %8 = arith.addf %6, %7 : vector<2x32xf32>
    %9 = arith.truncf %1 : vector<16x32xf32> to vector<16x32xbf16>
    %cst_11 = arith.constant dense<0.000000e+00> : vector<16x32xf32>
    %10 = tpu.matmul %9, %3, %cst_11 {dimension_numbers = #tpu.dot_dimension_numbers<[1], [0], [0], [1], [0, 0, 1, 1], [], []>} : vector<16x32xbf16>, vector<32x32xbf16>, vector<16x32xf32> -> vector<16x32xf32>
    %11 = vector.shape_cast %10 : vector<16x32xf32> to vector<2x8x32xf32>
    %12 = vector.shape_cast %1 : vector<16x32xf32> to vector<2x8x32xf32>
    %13 = vector.shape_cast %8 : vector<2x32xf32> to vector<2x1x32xf32>
    %14 = vector.broadcast %13 : vector<2x1x32xf32> to vector<2x8x32xf32>
    %15 = arith.addf %11, %14 : vector<2x8x32xf32>
    %16 = math.tanh %15 : vector<2x8x32xf32>
    %17 = vector.shape_cast %5 : vector<1x32xf32> to vector<1x1x32xf32>
    %18 = vector.broadcast %17 : vector<1x1x32xf32> to vector<2x8x32xf32>
    %19 = arith.mulf %16, %18 : vector<2x8x32xf32>
    %cst_12 = arith.constant dense<0.000000e+00> : vector<2x8xf32>
    %20 = vector.multi_reduction <add>, %19, %cst_12 [2] : vector<2x8x32xf32> to vector<2x8xf32>
    %cst_13 = arith.constant dense<0xFF800000> : vector<2xf32>
    %21 = vector.multi_reduction <maximumf>, %20, %cst_13 [1] : vector<2x8xf32> to vector<2xf32>
    %22 = vector.shape_cast %21 : vector<2xf32> to vector<2x1xf32>
    %23 = vector.broadcast %22 : vector<2x1xf32> to vector<2x8xf32>
    %24 = arith.subf %20, %23 : vector<2x8xf32>
    %25 = math.exp %24 : vector<2x8xf32>
    %cst_14 = arith.constant dense<0.000000e+00> : vector<2xf32>
    %26 = vector.multi_reduction <add>, %25, %cst_14 [1] : vector<2x8xf32> to vector<2xf32>
    %27 = vector.shape_cast %26 : vector<2xf32> to vector<2x1xf32>
    %28 = tpu.reciprocal %27 : vector<2x1xf32> -> vector<2x1xf32>
    %29 = vector.broadcast %28 : vector<2x1xf32> to vector<2x8xf32>
    %30 = arith.mulf %25, %29 : vector<2x8xf32>
    %31 = vector.shape_cast %30 : vector<2x8xf32> to vector<2x8x1xf32>
    %32 = vector.broadcast %31 : vector<2x8x1xf32> to vector<2x8x32xf32>
    %33 = arith.mulf %12, %32 : vector<2x8x32xf32>
    %cst_15 = arith.constant dense<0.000000e+00> : vector<2x32xf32>
    %34 = vector.multi_reduction <add>, %33, %cst_15 [1] : vector<2x8x32xf32> to vector<2x32xf32>
    %c0_16 = arith.constant 0 : index
    %c0_17 = arith.constant 0 : index
    %35 = vector.load %arg6[%c0_16, %c0_17] : memref<2x32xf32, #tpu.memory_space<vmem>>, vector<2x32xf32>
    tpu.vector_store %arg6[%c0_16, %c0_17], %34 {strides = array<i32>} : memref<2x32xf32, #tpu.memory_space<vmem>>, vector<2x32xf32>,
    %c0_18 = arith.constant 0 : index
    %c0_19 = arith.constant 0 : index
    %36 = vector.load %arg7[%c0_18, %c0_19] : memref<2x8xf32, #tpu.memory_space<vmem>>, vector<2x8xf32>
    tpu.vector_store %arg7[%c0_18, %c0_19], %30 {strides = array<i32>} : memref<2x8xf32, #tpu.memory_space<vmem>>, vector<2x8xf32>,
    return
  }
}

</mosaic_0001>

<llo_original>
// kernel: tpu_custom_call.1
$region0: #{tpu_custom_call.1}
  #allocation0 [shape = 'u32[]', space=smem, size = 0x4, offset = 0x4, fixed_abs, tag = 'smem constant byte address 0x4 - core index']
  #allocation1 [shape = 'u32[144,128]{1,0:T(1,128)}', space=vmem, size = 0x12000, scoped, tag = 'internal scratch']
  %s0 = inlined_call_operand.hbm [shape: bf16[2,32], index: 0, kind: input, shape index: {}]
  %s1 = inlined_call_operand.hbm [shape: f32[16,32], index: 1, kind: input, shape index: {}]
  %s2 = inlined_call_operand.hbm [shape: bf16[32,32], index: 2, kind: input, shape index: {}]
  %s3 = inlined_call_operand.hbm [shape: bf16[32,32], index: 3, kind: input, shape index: {}]
  %s4 = inlined_call_operand.vmem [shape: f32[1,32], index: 4, kind: input, shape index: {}]
  %s5 = inlined_call_operand.vmem [shape: f32[1,32], index: 5, kind: input, shape index: {}]
  %s6 = inlined_call_operand.hbm [shape: f32[2,32], index: 6, kind: output, shape index: {0}]
  %s7 = inlined_call_operand.hbm [shape: f32[2,8], index: 7, kind: output, shape index: {1}]
  %8 = xla_tuple %s6, %s7
  %s9 = sld [smem:[#allocation0]]
  $region58: #{tpu_custom_call.1} parent=0
    _
  %s11 = ssub.s32 1, %s9
  %s12 = scalar_select 0, %s11, %s9
  $region1: #{tpu_custom_call.1} parent=0
    #allocation2 [shape = 'u8[512]{0}', space=vmem, size = 0x400, scoped, tag = 'input window, operand 0, single buffered']
    #allocation3 [shape = 's32[1]{0}', space=sflag, size = 0x4, scoped, tag = 'scoped memory for tpu_custom_call.1']
    #allocation4 [shape = 's32[1]{0}', space=sflag, size = 0x4, scoped, tag = 'scoped memory for tpu_custom_call.1']
    #allocation5 [shape = 'u8[8192]{0}', space=vmem, size = 0x2000, scoped, tag = 'input window, operand 1, single buffered']
    #allocation6 [shape = 's32[1]{0}', space=sflag, size = 0x4, scoped, tag = 'scoped memory for tpu_custom_call.1']
    #allocation7 [shape = 'u8[8192]{0}', space=vmem, size = 0x2000, scoped, tag = 'input window, operand 2, single buffered']
    #allocation8 [shape = 'u8[8192]{0}', space=vmem, size = 0x2000, scoped, tag = 'input window, operand 3, single buffered']
    #allocation9 [shape = 's32[1]{0}', space=sflag, size = 0x4, scoped, tag = 'scoped memory for tpu_custom_call.1']
    #allocation10 [shape = 'u8[1024]{0}', space=vmem, size = 0x400, scoped, tag = 'output window, operand 0, single buffered']
    #allocation11 [shape = 'u8[1024]{0}', space=vmem, size = 0x400, scoped, tag = 'output window, operand 1, single buffered']
    #allocation12 [shape = 's32[1]{0}', space=sflag, size = 0x4, scoped, tag = 'scoped memory for tpu_custom_call.1']
    %13 = vsyncpa [#allocation3], 0
    %14 = vsyncpa [#allocation6], 0
    %15 = vsyncpa [#allocation9], 0
    %16 = vsyncpa [#allocation4], 0
    %17 = vsyncpa [#allocation12], 0
    // Predicated region
    $region2: #{tpu_custom_call.1} parent=1 // pred_check
      _
    $region3: #{tpu_custom_call.1} parent=1 // pred_check_branch
      %19 = sbr.rel (0) target = $region5
    $region4: #{tpu_custom_call.1} parent=1 // pred_region
      %s21 = ssub.s32 16, 16
      %22 = vsyncadd [#allocation3], %s21
      %s24 = sshll.u32 [#allocation2], 4
      %s25 = int_to_ptr.vmem [resolvable:$true] %s24
      %27 = dma.hbm_to_vmem [thread:$0]  %s0, 16, %s25, [#allocation3]
    $region5: #{tpu_custom_call.1} parent=1 // pred_fallthru
      _
    // Predicated region
    $region6: #{tpu_custom_call.1} parent=1 // pred_check
      _
    $region7: #{tpu_custom_call.1} parent=1 // pred_check_branch
      %29 = sbr.rel (0) target = $region9
    $region8: #{tpu_custom_call.1} parent=1 // pred_region
      %s31 = ssub.s32 256, 256
      %32 = vsyncadd [#allocation6], %s31
      %s33 = sshll.u32 [#allocation5], 4
      %s34 = int_to_ptr.vmem [resolvable:$true] %s33
      %39 = dma.hbm_to_vmem [thread:$0]  %s1, 256, %s34, [#allocation6], 128, 128, 8
    $region9: #{tpu_custom_call.1} parent=1 // pred_fallthru
      _
    // Predicated region
    $region10: #{tpu_custom_call.1} parent=1 // pred_check
      _
    $region11: #{tpu_custom_call.1} parent=1 // pred_check_branch
      %41 = sbr.rel (0) target = $region13
    $region12: #{tpu_custom_call.1} parent=1 // pred_region
      %s43 = ssub.s32 256, 256
      %44 = vsyncadd [#allocation6], %s43
      %s45 = sshll.u32 [#allocation7], 4
      %s46 = int_to_ptr.vmem [resolvable:$true] %s45
      %51 = dma.hbm_to_vmem [thread:$0]  %s2, 256, %s46, [#allocation6], 64, 64, 4
    $region13: #{tpu_custom_call.1} parent=1 // pred_fallthru
      _
    // Predicated region
    $region14: #{tpu_custom_call.1} parent=1 // pred_check
      _
    $region15: #{tpu_custom_call.1} parent=1 // pred_check_branch
      %53 = sbr.rel (0) target = $region17
    $region16: #{tpu_custom_call.1} parent=1 // pred_region
      %s55 = ssub.s32 256, 256
      %56 = vsyncadd [#allocation9], %s55
      %s57 = sshll.u32 [#allocation8], 4
      %s58 = int_to_ptr.vmem [resolvable:$true] %s57
      %63 = dma.hbm_to_vmem [thread:$0]  %s3, 256, %s58, [#allocation9], 64, 64, 4
    $region17: #{tpu_custom_call.1} parent=1 // pred_fallthru
      _
    // Predicated region
    $region18: #{tpu_custom_call.1} parent=1 // pred_check
      _
    $region19: #{tpu_custom_call.1} parent=1 // pred_check_branch
      %65 = sbr.rel (0) target = $region21
    $region20: #{tpu_custom_call.1} parent=1 // pred_region
      _
    $region21: #{tpu_custom_call.1} parent=1 // pred_fallthru
      _
    // Predicated region
    $region22: #{tpu_custom_call.1} parent=1 // pred_check
      _
    $region23: #{tpu_custom_call.1} parent=1 // pred_check_branch
      %67 = sbr.rel (0) target = $region25
    $region24: #{tpu_custom_call.1} parent=1 // pred_region
      _
    $region25: #{tpu_custom_call.1} parent=1 // pred_fallthru
      _
    // Predicated region
    $region26: #{tpu_custom_call.1} parent=1 // pred_check
      _
    $region27: #{tpu_custom_call.1} parent=1 // pred_check_branch
      %69 = sbr.rel (0) target = $region29
    $region28: #{tpu_custom_call.1} parent=1 // pred_region
      %70 = dma.done [#allocation3], 16
    $region29: #{tpu_custom_call.1} parent=1 // pred_fallthru
      _
    // Predicated region
    $region30: #{tpu_custom_call.1} parent=1 // pred_check
      _
    $region31: #{tpu_custom_call.1} parent=1 // pred_check_branch
      %72 = sbr.rel (0) target = $region33
    $region32: #{tpu_custom_call.1} parent=1 // pred_region
      %73 = dma.done [#allocation6], 256
    $region33: #{tpu_custom_call.1} parent=1 // pred_fallthru
      _
    // Predicated region
    $region34: #{tpu_custom_call.1} parent=1 // pred_check
      _
    $region35: #{tpu_custom_call.1} parent=1 // pred_check_branch
      %75 = sbr.rel (0) target = $region37
    $region36: #{tpu_custom_call.1} parent=1 // pred_region
      %76 = dma.done [#allocation6], 256
    $region37: #{tpu_custom_call.1} parent=1 // pred_fallthru
      _
    // Predicated region
    $region38: #{tpu_custom_call.1} parent=1 // pred_check
      _
    $region39: #{tpu_custom_call.1} parent=1 // pred_check_branch
      %78 = sbr.rel (0) target = $region41
    $region40: #{tpu_custom_call.1} parent=1 // pred_region
      %79 = dma.done [#allocation9], 256
    $region41: #{tpu_custom_call.1} parent=1 // pred_fallthru
      _
    %v81 = vld [vmem:[#allocation2] sm:$0x1]
    %v82 = vld [vmem:[#allocation5] sm:$0xff]
    %v83 = vld [vmem:[#allocation5 + $0x8] sm:$0xff]
    %v84 = vld [vmem:[#allocation7] sm:$0xf]
    %v85 = vld [vmem:[#allocation7 + $0x4] sm:$0xf]
    %v86 = vld [vmem:[#allocation7 + $0x8] sm:$0xf]
    %v87 = vld [vmem:[#allocation7 + $0xc] sm:$0xf]
    %v88 = vld [vmem:[#allocation8] sm:$0xf]
    %v89 = vld [vmem:[#allocation8 + $0x4] sm:$0xf]
    %v90 = vld [vmem:[#allocation8 + $0x8] sm:$0xf]
    %v91 = vld [vmem:[#allocation8 + $0xc] sm:$0xf]
    %v92 = vld [vmem:[%s4] sm:$0x1]
    %v93 = vld [vmem:[%s5] sm:$0x1]
    %v95 = vlaneseq
    %v96 = vshrl.u32 %v95, 7
    %v97 = vsub.s32 0, %v96
    %v98 = vrot.slane %v92, %v97
    %v104 = vunpack.c.l.b16 %v84
    %v105 = vunpack.c.l.b16 %v85
    %v106 = vunpack.c.l.b16 %v86
    %v107 = vunpack.c.l.b16 %v87
    %v108 = vpack.c.b16 %v105, %v104
    %v109 = vpack.c.b16 %v107, %v106
    %vm112 = vcmask 261120
    %v114 = vsel %vm112, %v81, 0
    %116 = vmatprep.subr.bf16.mxu0 0
    %117 = vmatpush1.bf16.msra.mxu0 %v108
    %118 = vmatprep.subr.bf16.mxu0 0
    %119 = vmatpush1.bf16.msra.mxu0 %v109
    %120 = vmatprep.subr.bf16.mxu0 0
    %121 = vmatpush1.bf16.msra.mxu0 0
    %122 = vmatprep.subr.bf16.mxu0 0
    %123 = vmatpush1.bf16.msra.mxu0 0
    %124 = vmatprep.subr.bf16.mxu0 0
    %125 = vmatpush1.bf16.msra.mxu0 0
    %126 = vmatprep.subr.bf16.mxu0 0
    %127 = vmatpush1.bf16.msra.mxu0 0
    %128 = vmatprep.subr.bf16.mxu0 0
    %129 = vmatpush1.bf16.msra.mxu0 0
    %130 = vmatprep.subr.bf16.mxu0 0
    %131 = vmatpush1.bf16.msra.mxu0 0
    %132 = vmatprep.subr.bf16.mxu0 0
    %133 = vmatpush1.bf16.msra.mxu0 0
    %134 = vmatprep.subr.bf16.mxu0 0
    %135 = vmatpush1.bf16.msra.mxu0 0
    %136 = vmatprep.subr.bf16.mxu0 0
    %137 = vmatpush1.bf16.msra.mxu0 0
    %138 = vmatprep.subr.bf16.mxu0 0
    %139 = vmatpush1.bf16.msra.mxu0 0
    %140 = vmatprep.subr.bf16.mxu0 0
    %141 = vmatpush1.bf16.msra.mxu0 0
    %142 = vmatprep.subr.bf16.mxu0 0
    %143 = vmatpush1.bf16.msra.mxu0 0
    %144 = vmatprep.subr.bf16.mxu0 0
    %145 = vmatpush1.bf16.msra.mxu0 0
    %146 = vmatprep.subr.bf16.mxu0 0
    %147 = vmatpush1.bf16.msra.mxu0 0
    %148 = vmatprep.mubr.bf16.mxu0 0
    %149 = vmatmul.mubr.bf16.gmra.mrb[0].mxu0 %v114
    %v150 = vpop.f32.mrb[0].mxu0
    %v151 = vadd.f32 %v98, %v150
    %v152 = vpop.f32.mrb[0].mxu0
    %v153 = vpop.f32.mrb[0].mxu0
    %v154 = vpop.f32.mrb[0].mxu0
    %155 = vdwg.mxu0
    %v156 = vpack.c.bf16 %v83, %v82
    %v161 = vunpack.c.l.b16 %v88
    %v162 = vunpack.c.l.b16 %v89
    %v163 = vunpack.c.l.b16 %v90
    %v164 = vunpack.c.l.b16 %v91
    %v165 = vpack.c.b16 %v162, %v161
    %v166 = vpack.c.b16 %v164, %v163
    %v170 = vsel %vm112, %v156, 0
    %172 = vmatprep.subr.bf16.mxu0 0
    %173 = vmatpush1.bf16.msra.mxu0 %v165
    %174 = vmatprep.subr.bf16.mxu0 0
    %175 = vmatpush1.bf16.msra.mxu0 %v166
    %176 = vmatprep.subr.bf16.mxu0 0
    %177 = vmatpush1.bf16.msra.mxu0 0
    %178 = vmatprep.subr.bf16.mxu0 0
    %179 = vmatpush1.bf16.msra.mxu0 0
    %180 = vmatprep.subr.bf16.mxu0 0
    %181 = vmatpush1.bf16.msra.mxu0 0
    %182 = vmatprep.subr.bf16.mxu0 0
    %183 = vmatpush1.bf16.msra.mxu0 0
    %184 = vmatprep.subr.bf16.mxu0 0
    %185 = vmatpush1.bf16.msra.mxu0 0
    %186 = vmatprep.subr.bf16.mxu0 0
    %187 = vmatpush1.bf16.msra.mxu0 0
    %188 = vmatprep.subr.bf16.mxu0 0
    %189 = vmatpush1.bf16.msra.mxu0 0
    %190 = vmatprep.subr.bf16.mxu0 0
    %191 = vmatpush1.bf16.msra.mxu0 0
    %192 = vmatprep.subr.bf16.mxu0 0
    %193 = vmatpush1.bf16.msra.mxu0 0
    %194 = vmatprep.subr.bf16.mxu0 0
    %195 = vmatpush1.bf16.msra.mxu0 0
    %196 = vmatprep.subr.bf16.mxu0 0
    %197 = vmatpush1.bf16.msra.mxu0 0
    %198 = vmatprep.subr.bf16.mxu0 0
    %199 = vmatpush1.bf16.msra.mxu0 0
    %200 = vmatprep.subr.bf16.mxu0 0
    %201 = vmatpush1.bf16.msra.mxu0 0
    %202 = vmatprep.subr.bf16.mxu0 0
    %203 = vmatpush1.bf16.msra.mxu0 0
    %204 = vmatprep.mubr.bf16.mxu0 0
    %205 = vmatmul.mubr.bf16.gmra.mrb[0].mxu0 %v170
    %v206 = vpop.f32.mrb[0].mxu0
    %v207 = vadd.f32 0.0, %v206
    %v208 = vpop.f32.mrb[0].mxu0
    %v209 = vpop.f32.mrb[0].mxu0
    %v210 = vadd.f32 0.0, %v209
    %v211 = vpop.f32.mrb[0].mxu0
    %212 = vdwg.mxu0
    %v215 = vunpack.c.l.s4 1966171168
    %v216 = vunpack.c.0.s8 %v215
    %v217 = vlaneseq
    %v218 = vshrl.u32 %v217, 7
    %v219 = vsub.s32 %v216, %v218
    %v220 = vrot.slane %v151, %v219
    %v221 = vcombine.high %v220, %v220
    %v223 = vunpack.c.l.s4 1966171168
    %v224 = vunpack.c.0.s8 %v223
    %v225 = vlaneseq
    %v226 = vshrl.u32 %v225, 7
    %v227 = vsub.s32 %v224, %v226
    %v228 = vrot.slane %v220, %v227
    %v230 = vunpack.c.l.s4 1966171168
    %v231 = vunpack.c.0.s8 %v230
    %v232 = vlaneseq
    %v233 = vshrl.u32 %v232, 7
    %v234 = vsub.s32 %v231, %v233
    %v235 = vrot.slane %v221, %v234
    %v236 = vlaneseq
    %v237 = vshrl.u32 %v236, 7
    %v238 = vsub.s32 0, %v237
    %v239 = vrot.slane %v228, %v238
    %v240 = vlaneseq
    %v241 = vshrl.u32 %v240, 7
    %v242 = vsub.s32 0, %v241
    %v243 = vrot.slane %v235, %v242
    %v246 = vadd.f32 %v207, %v239
    %v247 = vadd.f32 %v210, %v243
    %v248 = vtanh.pop %v246
    %v249 = vtanh.pop %v247
    %v251 = vlaneseq
    %v252 = vshrl.u32 %v251, 7
    %v253 = vsub.s32 0, %v252
    %v254 = vrot.slane %v93, %v253
    %v256 = vmul.f32 %v248, %v254
    %v257 = vmul.f32 %v249, %v254
    %v258 = vsel %vm112, %v256, 0.0
    %259 = vadd.xlane.f32.xlu0 %v258
    %v260 = vpop.xlane.xlu0 %259
    %v261 = vsel %vm112, %v257, 0.0
    %262 = vadd.xlane.f32.xlu0 %v261
    %v263 = vpop.xlane.xlu0 %262
    %v266 = vlaneseq
    %v267 = vand.u32 %v266, 127
    %v268 = vlaneseq
    %v269 = vshrl.u32 %v268, 7
    %v270 = vsub.s32 %v267, %v269
    %v271 = vrot.slane %v260, %v270
    %v272 = vlaneseq
    %v273 = vshrl.u32 %v272, 7
    %v274 = vsub.s32 %v267, %v273
    %v275 = vrot.slane %v263, %v274
    %vm276 = vcmask 1041409
    %v277 = vsel %vm276, %v275, %v271
    %vm279 = vcmask 58368
    %v280 = vsel %vm279, %v277, -inf
    %281 = vmax.xlane.f32.xlu0 %v280
    %v282 = vpop.xlane.xlu0 %281
    %v284 = vlaneseq
    %v285 = vshrl.u32 %v284, 7
    %v286 = vsub.s32 0, %v285
    %v287 = vrot.slane %v282, %v286
    %v288 = vlaneseq
    %v289 = vshrl.u32 %v288, 7
    %v290 = vsub.s32 1, %v289
    %v291 = vrot.slane %v282, %v290
    %v294 = vsub.f32 %v260, %v287
    %v295 = vsub.f32 %v263, %v291
    %v296 = vmul.f32 %v294, 1.442695
    %v297 = vpow.pop %v296
    %v298 = vmul.f32 %v295, 1.442695
    %v299 = vpow.pop %v298
    %302 = vset.pattern.permute.xlu0 0
    %303 = vperm.xlu0 %302, %v297
    %v304 = vpop.permute.xlu0 %303
    %305 = vset.pattern.permute.xlu0 0
    %306 = vperm.xlu0 %305, %v299
    %v307 = vpop.permute.xlu0 %306
    %v308 = vlaneseq
    %v309 = vshrl.u32 %v308, 7
    %v310 = vsub.s32 %v267, %v309
    %v311 = vrot.slane %v304, %v310
    %v312 = vlaneseq
    %v313 = vshrl.u32 %v312, 7
    %v314 = vsub.s32 %v267, %v313
    %v315 = vrot.slane %v307, %v314
    %v316 = vsel %vm276, %v315, %v311
    %v318 = vsel %vm279, %v316, 0.0
    %319 = vadd.xlane.f32.xlu0 %v318
    %v320 = vpop.xlane.xlu0 %319
    %v321 = vrcp.pop %v320
    %v323 = vlaneseq
    %v324 = vshrl.u32 %v323, 7
    %v325 = vsub.s32 0, %v324
    %v326 = vrot.slane %v321, %v325
    %v327 = vlaneseq
    %v328 = vshrl.u32 %v327, 7
    %v329 = vsub.s32 1, %v328
    %v330 = vrot.slane %v321, %v329
    %v333 = vmul.f32 %v297, %v326
    %v334 = vmul.f32 %v299, %v330
    %336 = vset.pattern.permute.xlu0 0
    %337 = vperm.xlu0 %336, %v333
    %v338 = vpop.permute.xlu0 %337
    %341 = vset.pattern.permute.xlu0 0
    %342 = vperm.xlu0 %341, %v334
    %v343 = vpop.permute.xlu0 %342
    %v345 = vmul.f32 %v82, %v338
    %v346 = vmul.f32 %v83, %v343
    %v347 = vsel %vm112, %v345, 0.0
    %v348 = vrot.slane %v347, 4
    %v349 = vadd.f32 %v347, %v348
    %v350 = vrot.slane %v349, 2
    %v351 = vadd.f32 %v349, %v350
    %v352 = vrot.slane %v351, 1
    %v353 = vadd.f32 %v351, %v352
    %v354 = vsel %vm112, %v346, 0.0
    %v355 = vrot.slane %v354, 4
    %v356 = vadd.f32 %v354, %v355
    %v357 = vrot.slane %v356, 2
    %v358 = vadd.f32 %v356, %v357
    %v359 = vrot.slane %v358, 1
    %v360 = vadd.f32 %v358, %v359
    %v363 = vsel %vm276, %v360, %v353
    %vm365 = vcmask 254976
    %366 = vst.msk [vmem:[#allocation10] sm:$0x3] %vm365, %v363
    %v367 = vlaneseq
    %v368 = vshrl.u32 %v367, 7
    %v369 = vsub.s32 %v267, %v368
    %v370 = vrot.slane %v338, %v369
    %v371 = vlaneseq
    %v372 = vshrl.u32 %v371, 7
    %v373 = vsub.s32 %v267, %v372
    %v374 = vrot.slane %v343, %v373
    %v375 = vsel %vm276, %v374, %v370
    %377 = vst.msk [vmem:[#allocation11] sm:$0x3] %vm279, %v375
    // Predicated region
    $region42: #{tpu_custom_call.1} parent=1 // pred_check
      _
    $region43: #{tpu_custom_call.1} parent=1 // pred_check_branch
      %379 = sbr.rel (0) target = $region45
    $region44: #{tpu_custom_call.1} parent=1 // pred_region
      %s381 = ssub.s32 32, 32
      %382 = vsyncadd [#allocation4], %s381
      %s384 = sshll.u32 [#allocation10], 4
      %s385 = int_to_ptr.vmem [resolvable:$true] %s384
      %387 = dma.vmem_to_hbm [thread:$0]  %s385, 32, %s6, [#allocation4]
    $region45: #{tpu_custom_call.1} parent=1 // pred_fallthru
      _
    // Predicated region
    $region46: #{tpu_custom_call.1} parent=1 // pred_check
      _
    $region47: #{tpu_custom_call.1} parent=1 // pred_check_branch
      %389 = sbr.rel (0) target = $region49
    $region48: #{tpu_custom_call.1} parent=1 // pred_region
      %s391 = ssub.s32 32, 32
      %392 = vsyncadd [#allocation12], %s391
      %s394 = sshll.u32 [#allocation11], 4
      %s395 = int_to_ptr.vmem [resolvable:$true] %s394
      %397 = dma.vmem_to_hbm [thread:$0]  %s395, 32, %s7, [#allocation12]
    $region49: #{tpu_custom_call.1} parent=1 // pred_fallthru
      _
    // Predicated region
    $region50: #{tpu_custom_call.1} parent=1 // pred_check
      _
    $region51: #{tpu_custom_call.1} parent=1 // pred_check_branch
      %399 = sbr.rel (0) target = $region53
    $region52: #{tpu_custom_call.1} parent=1 // pred_region
      %400 = dma.done [#allocation4], 32
    $region53: #{tpu_custom_call.1} parent=1 // pred_fallthru
      _
    // Predicated region
    $region54: #{tpu_custom_call.1} parent=1 // pred_check
      _
    $region55: #{tpu_custom_call.1} parent=1 // pred_check_branch
      %402 = sbr.rel (0) target = $region57
    $region56: #{tpu_custom_call.1} parent=1 // pred_region
      %403 = dma.done [#allocation12], 32
    $region57: #{tpu_custom_call.1} parent=1 // pred_fallthru
      _
    %404 = vsyncpa [#allocation3], 1
    %405 = vsyncpa [#allocation6], 1
    %406 = vsyncpa [#allocation9], 1
    %407 = vsyncpa [#allocation4], 1
    %408 = vsyncpa [#allocation12], 1

</llo_original>
